<compile_context>
chip_gen: v6e
topology: v6e:2x2x1
jax: 0.10.0
libtpu: 0.0.40
codegen_flags: <defaults>
</compile_context>

<pallas_src>
import jax
import jax.numpy as jnp
from jax.experimental import pallas as pl
from jax.experimental.pallas import tpu as pltpu


def _outconv_kernel(w_ref, b_ref, x_ref, o_ref):
    """Per-block 1x1 conv via unrolled VPU FMAs.

    w_ref: SMEM (Cout, Cin)            -- resident weights (scalar reads)
    b_ref: SMEM (Cout,)                -- resident bias    (scalar reads)
    x_ref: VMEM (N, Cin, TS, 128) or (N, Cin, TL)
    o_ref: VMEM (N, Cout, TS, 128) or (N, Cout, TL)
    """
    cout = o_ref.shape[1]
    cin = x_ref.shape[1]
    for co in range(cout):
        acc = x_ref[:, 0].astype(jnp.float32) * w_ref[co, 0]
        for ci in range(1, cin):
            acc = acc + x_ref[:, ci].astype(jnp.float32) * w_ref[co, ci]
        o_ref[:, co] = (acc + b_ref[co]).astype(o_ref.dtype)


_VMEM_BLOCK_BUDGET = 16 * 1024 * 1024   # double-buffered in+out block bytes
_MIN_GRID_STEPS = 8                     # keep both v7x TensorCores fed


def outconv_pallas(x_nchw, weight, bias):
    """1x1 Conv2d forward.

    x_nchw: (N, Cin, H, W)
    weight: (Cout, Cin, 1, 1)  (PyTorch Conv2d layout)
    bias:   (Cout,)
    returns (N, Cout, H, W)
    """
    N, Cin, H, W = x_nchw.shape
    Cout = weight.shape[0]
    L = H * W
    itemsize = jnp.dtype(x_nchw.dtype).itemsize

    w_mat = weight.reshape(Cout, Cin).astype(jnp.float32)
    b_vec = bias.reshape(Cout).astype(jnp.float32)

    cost = pl.CostEstimate(
        flops=2 * N * L * Cin * Cout,
        transcendentals=0,
        bytes_accessed=N * (Cin + Cout) * L * itemsize
        + w_mat.size * 4 + b_vec.size * 4,
    )
    cparams = pltpu.CompilerParams(
        dimension_semantics=("parallel",),
        vmem_limit_bytes=32 * 1024 * 1024,
    )
    smem_spec = pl.BlockSpec(memory_space=pltpu.MemorySpace.SMEM)

    if L % 128 == 0:
        # Fast path: lane-dense slabs (N, Cin, nS, 128), fully dense vregs.
        nS = L // 128
        x4 = x_nchw.reshape(N, Cin, nS, 128)

        # Double-buffered bytes per unit of TS (in + out blocks, full batch).
        per_ts = 2 * (Cin + Cout) * N * 128 * itemsize
        ts_cap = max(8, (_VMEM_BLOCK_BUDGET // per_ts) // 8 * 8)
        ts = max(8, min(ts_cap, pl.cdiv(nS, _MIN_GRID_STEPS)))
        ts = max(8, (ts // 8) * 8)          # multiple of 8 sublanes
        if ts >= nS:
            ts = nS                         # full extent: always a legal block

        grid = (pl.cdiv(nS, ts),)
        out4 = pl.pallas_call(
            _outconv_kernel,
            out_shape=jax.ShapeDtypeStruct((N, Cout, nS, 128), x_nchw.dtype),
            grid=grid,
            in_specs=[
                smem_spec,                                            # weights
                smem_spec,                                            # bias
                pl.BlockSpec((N, Cin, ts, 128), lambda s: (0, 0, s, 0)),
            ],
            out_specs=pl.BlockSpec((N, Cout, ts, 128), lambda s: (0, 0, s, 0)),
            compiler_params=cparams,
            cost_estimate=cost,
        )(w_mat, b_vec, x4)
        return out4.reshape(N, Cout, H, W)

    # Fallback (L not a multiple of 128): (N, Cin, L) with a 128-multiple lane
    # tile; Pallas masks the partial boundary block, so still no pad / slice.
    x3 = x_nchw.reshape(N, Cin, L)
    per_tl = 2 * 2 * N * 8 * itemsize        # in + out, 8 padded sublanes each
    tl_cap = max(128, (_VMEM_BLOCK_BUDGET // per_tl) // 128 * 128)
    tl = max(128, min(tl_cap, pl.cdiv(L, _MIN_GRID_STEPS * 128) * 128))
    if tl >= L:
        tl = L                               # full extent: legal block shape

    grid = (pl.cdiv(L, tl),)
    out3 = pl.pallas_call(
        _outconv_kernel,
        out_shape=jax.ShapeDtypeStruct((N, Cout, L), x_nchw.dtype),
        grid=grid,
        in_specs=[
            smem_spec,
            smem_spec,
            pl.BlockSpec((N, Cin, tl), lambda s: (0, 0, s)),
        ],
        out_specs=pl.BlockSpec((N, Cout, tl), lambda s: (0, 0, s)),
        compiler_params=cparams,
        cost_estimate=cost,
    )(w_mat, b_vec, x3)
    return out3.reshape(N, Cout, H, W)


if __name__ == "__main__":
    key = jax.random.PRNGKey(0)
    k_x, k_w, k_b = jax.random.split(key, 3)

    N, Cin, H, W = 2, 4, 16, 16
    Cout = 3

    # Deterministic parameter init (mimics Conv2d's uniform fan-in init).
    fan_in = float(Cin * 1 * 1)
    bound = 1.0 / (fan_in ** 0.5)
    weight = jax.random.uniform(k_w, (Cout, Cin, 1, 1), jnp.float32, -bound, bound)
    bias = jax.random.uniform(k_b, (Cout,), jnp.float32, -bound, bound)
    x = jax.random.normal(k_x, (N, Cin, H, W), jnp.float32)

    y = outconv_pallas(x, weight, bias)
    jax.block_until_ready(y)

    # Reference check against plain-JAX 1x1 conv semantics.
    y_ref = (jnp.einsum("nchw,oc->nohw", x, weight.reshape(Cout, Cin))
             + bias[None, :, None, None])
    assert y.shape == (N, Cout, H, W)
    assert jnp.allclose(y, y_ref, atol=1e-5, rtol=1e-5), "mismatch vs reference"

    print("KERNEL_OK")
</pallas_src>

<mosaic_0001>
module attributes {stable_mosaic.version = 11 : i64} {
  func.func @_outconv_kernel(%arg0: i32, %arg1: memref<3x4xf32, #tpu.memory_space<smem>>, %arg2: memref<3xf32, #tpu.memory_space<smem>>, %arg3: memref<2x4x2x128xf32, #tpu.memory_space<vmem>>, %arg4: memref<2x3x2x128xf32, #tpu.memory_space<vmem>>) attributes {dimension_semantics = [#tpu.dimension_semantics<parallel>], iteration_bounds = array<i64: 1>, scalar_prefetch = 0 : i64, scratch_operands = 0 : i64, tpu.core_type = #tpu.core_type<tc>, window_params = [{transform_indices = @transform_0, window_bounds = array<i64: 3, 4>}, {transform_indices = @transform_1, window_bounds = array<i64: 3>}, {transform_indices = @transform_2, window_bounds = array<i64: 2, 4, 2, 128>}, {transform_indices = @transform_3, window_bounds = array<i64: 2, 3, 2, 128>}]} {
    %c0 = arith.constant 0 : index
    %c0_0 = arith.constant 0 : index
    %c0_1 = arith.constant 0 : index
    %c0_2 = arith.constant 0 : index
    %0 = vector.load %arg3[%c0, %c0_0, %c0_1, %c0_2] : memref<2x4x2x128xf32, #tpu.memory_space<vmem>>, vector<2x1x2x128xf32>
    %1 = vector.shape_cast %0 : vector<2x1x2x128xf32> to vector<2x2x128xf32>
    %c0_3 = arith.constant 0 : index
    %c0_4 = arith.constant 0 : index
    %2 = memref.load %arg1[%c0_3, %c0_4] : memref<3x4xf32, #tpu.memory_space<smem>>
    %3 = vector.broadcast %2 : f32 to vector<2x2x128xf32>
    %4 = arith.mulf %1, %3 : vector<2x2x128xf32>
    %c0_5 = arith.constant 0 : index
    %c1 = arith.constant 1 : index
    %c0_6 = arith.constant 0 : index
    %c0_7 = arith.constant 0 : index
    %5 = vector.load %arg3[%c0_5, %c1, %c0_6, %c0_7] : memref<2x4x2x128xf32, #tpu.memory_space<vmem>>, vector<2x1x2x128xf32>
    %6 = vector.shape_cast %5 : vector<2x1x2x128xf32> to vector<2x2x128xf32>
    %c0_8 = arith.constant 0 : index
    %c1_9 = arith.constant 1 : index
    %7 = memref.load %arg1[%c0_8, %c1_9] : memref<3x4xf32, #tpu.memory_space<smem>>
    %8 = vector.broadcast %7 : f32 to vector<2x2x128xf32>
    %9 = arith.mulf %6, %8 : vector<2x2x128xf32>
    %10 = arith.addf %4, %9 : vector<2x2x128xf32>
    %c0_10 = arith.constant 0 : index
    %c2 = arith.constant 2 : index
    %c0_11 = arith.constant 0 : index
    %c0_12 = arith.constant 0 : index
    %11 = vector.load %arg3[%c0_10, %c2, %c0_11, %c0_12] : memref<2x4x2x128xf32, #tpu.memory_space<vmem>>, vector<2x1x2x128xf32>
    %12 = vector.shape_cast %11 : vector<2x1x2x128xf32> to vector<2x2x128xf32>
    %c0_13 = arith.constant 0 : index
    %c2_14 = arith.constant 2 : index
    %13 = memref.load %arg1[%c0_13, %c2_14] : memref<3x4xf32, #tpu.memory_space<smem>>
    %14 = vector.broadcast %13 : f32 to vector<2x2x128xf32>
    %15 = arith.mulf %12, %14 : vector<2x2x128xf32>
    %16 = arith.addf %10, %15 : vector<2x2x128xf32>
    %c0_15 = arith.constant 0 : index
    %c3 = arith.constant 3 : index
    %c0_16 = arith.constant 0 : index
    %c0_17 = arith.constant 0 : index
    %17 = vector.load %arg3[%c0_15, %c3, %c0_16, %c0_17] : memref<2x4x2x128xf32, #tpu.memory_space<vmem>>, vector<2x1x2x128xf32>
    %18 = vector.shape_cast %17 : vector<2x1x2x128xf32> to vector<2x2x128xf32>
    %c0_18 = arith.constant 0 : index
    %c3_19 = arith.constant 3 : index
    %19 = memref.load %arg1[%c0_18, %c3_19] : memref<3x4xf32, #tpu.memory_space<smem>>
    %20 = vector.broadcast %19 : f32 to vector<2x2x128xf32>
    %21 = arith.mulf %18, %20 : vector<2x2x128xf32>
    %22 = arith.addf %16, %21 : vector<2x2x128xf32>
    %c0_20 = arith.constant 0 : index
    %23 = memref.load %arg2[%c0_20] : memref<3xf32, #tpu.memory_space<smem>>
    %24 = vector.broadcast %23 : f32 to vector<2x2x128xf32>
    %25 = arith.addf %22, %24 : vector<2x2x128xf32>
    %c0_21 = arith.constant 0 : index
    %c0_22 = arith.constant 0 : index
    %c0_23 = arith.constant 0 : index
    %c0_24 = arith.constant 0 : index
    %26 = vector.load %arg4[%c0_21, %c0_22, %c0_23, %c0_24] : memref<2x3x2x128xf32, #tpu.memory_space<vmem>>, vector<2x1x2x128xf32>
    %27 = vector.shape_cast %26 : vector<2x1x2x128xf32> to vector<2x2x128xf32>
    %28 = vector.shape_cast %25 : vector<2x2x128xf32> to vector<2x1x2x128xf32>
    tpu.vector_store %arg4[%c0_21, %c0_22, %c0_23, %c0_24], %28 {strides = array<i32>} : memref<2x3x2x128xf32, #tpu.memory_space<vmem>>, vector<2x1x2x128xf32>,
    %c0_25 = arith.constant 0 : index
    %c0_26 = arith.constant 0 : index
    %c0_27 = arith.constant 0 : index
    %c0_28 = arith.constant 0 : index
    %29 = vector.load %arg3[%c0_25, %c0_26, %c0_27, %c0_28] : memref<2x4x2x128xf32, #tpu.memory_space<vmem>>, vector<2x1x2x128xf32>
    %30 = vector.shape_cast %29 : vector<2x1x2x128xf32> to vector<2x2x128xf32>
    %c1_29 = arith.constant 1 : index
    %c0_30 = arith.constant 0 : index
    %31 = memref.load %arg1[%c1_29, %c0_30] : memref<3x4xf32, #tpu.memory_space<smem>>
    %32 = vector.broadcast %31 : f32 to vector<2x2x128xf32>
    %33 = arith.mulf %30, %32 : vector<2x2x128xf32>
    %c0_31 = arith.constant 0 : index
    %c1_32 = arith.constant 1 : index
    %c0_33 = arith.constant 0 : index
    %c0_34 = arith.constant 0 : index
    %34 = vector.load %arg3[%c0_31, %c1_32, %c0_33, %c0_34] : memref<2x4x2x128xf32, #tpu.memory_space<vmem>>, vector<2x1x2x128xf32>
    %35 = vector.shape_cast %34 : vector<2x1x2x128xf32> to vector<2x2x128xf32>
    %c1_35 = arith.constant 1 : index
    %c1_36 = arith.constant 1 : index
    %36 = memref.load %arg1[%c1_35, %c1_36] : memref<3x4xf32, #tpu.memory_space<smem>>
    %37 = vector.broadcast %36 : f32 to vector<2x2x128xf32>
    %38 = arith.mulf %35, %37 : vector<2x2x128xf32>
    %39 = arith.addf %33, %38 : vector<2x2x128xf32>
    %c0_37 = arith.constant 0 : index
    %c2_38 = arith.constant 2 : index
    %c0_39 = arith.constant 0 : index
    %c0_40 = arith.constant 0 : index
    %40 = vector.load %arg3[%c0_37, %c2_38, %c0_39, %c0_40] : memref<2x4x2x128xf32, #tpu.memory_space<vmem>>, vector<2x1x2x128xf32>
    %41 = vector.shape_cast %40 : vector<2x1x2x128xf32> to vector<2x2x128xf32>
    %c1_41 = arith.constant 1 : index
    %c2_42 = arith.constant 2 : index
    %42 = memref.load %arg1[%c1_41, %c2_42] : memref<3x4xf32, #tpu.memory_space<smem>>
    %43 = vector.broadcast %42 : f32 to vector<2x2x128xf32>
    %44 = arith.mulf %41, %43 : vector<2x2x128xf32>
    %45 = arith.addf %39, %44 : vector<2x2x128xf32>
    %c0_43 = arith.constant 0 : index
    %c3_44 = arith.constant 3 : index
    %c0_45 = arith.constant 0 : index
    %c0_46 = arith.constant 0 : index
    %46 = vector.load %arg3[%c0_43, %c3_44, %c0_45, %c0_46] : memref<2x4x2x128xf32, #tpu.memory_space<vmem>>, vector<2x1x2x128xf32>
    %47 = vector.shape_cast %46 : vector<2x1x2x128xf32> to vector<2x2x128xf32>
    %c1_47 = arith.constant 1 : index
    %c3_48 = arith.constant 3 : index
    %48 = memref.load %arg1[%c1_47, %c3_48] : memref<3x4xf32, #tpu.memory_space<smem>>
    %49 = vector.broadcast %48 : f32 to vector<2x2x128xf32>
    %50 = arith.mulf %47, %49 : vector<2x2x128xf32>
    %51 = arith.addf %45, %50 : vector<2x2x128xf32>
    %c1_49 = arith.constant 1 : index
    %52 = memref.load %arg2[%c1_49] : memref<3xf32, #tpu.memory_space<smem>>
    %53 = vector.broadcast %52 : f32 to vector<2x2x128xf32>
    %54 = arith.addf %51, %53 : vector<2x2x128xf32>
    %c0_50 = arith.constant 0 : index
    %c1_51 = arith.constant 1 : index
    %c0_52 = arith.constant 0 : index
    %c0_53 = arith.constant 0 : index
    %55 = vector.load %arg4[%c0_50, %c1_51, %c0_52, %c0_53] : memref<2x3x2x128xf32, #tpu.memory_space<vmem>>, vector<2x1x2x128xf32>
    %56 = vector.shape_cast %55 : vector<2x1x2x128xf32> to vector<2x2x128xf32>
    %57 = vector.shape_cast %54 : vector<2x2x128xf32> to vector<2x1x2x128xf32>
    tpu.vector_store %arg4[%c0_50, %c1_51, %c0_52, %c0_53], %57 {strides = array<i32>} : memref<2x3x2x128xf32, #tpu.memory_space<vmem>>, vector<2x1x2x128xf32>,
    %c0_54 = arith.constant 0 : index
    %c0_55 = arith.constant 0 : index
    %c0_56 = arith.constant 0 : index
    %c0_57 = arith.constant 0 : index
    %58 = vector.load %arg3[%c0_54, %c0_55, %c0_56, %c0_57] : memref<2x4x2x128xf32, #tpu.memory_space<vmem>>, vector<2x1x2x128xf32>
    %59 = vector.shape_cast %58 : vector<2x1x2x128xf32> to vector<2x2x128xf32>
    %c2_58 = arith.constant 2 : index
    %c0_59 = arith.constant 0 : index
    %60 = memref.load %arg1[%c2_58, %c0_59] : memref<3x4xf32, #tpu.memory_space<smem>>
    %61 = vector.broadcast %60 : f32 to vector<2x2x128xf32>
    %62 = arith.mulf %59, %61 : vector<2x2x128xf32>
    %c0_60 = arith.constant 0 : index
    %c1_61 = arith.constant 1 : index
    %c0_62 = arith.constant 0 : index
    %c0_63 = arith.constant 0 : index
    %63 = vector.load %arg3[%c0_60, %c1_61, %c0_62, %c0_63] : memref<2x4x2x128xf32, #tpu.memory_space<vmem>>, vector<2x1x2x128xf32>
    %64 = vector.shape_cast %63 : vector<2x1x2x128xf32> to vector<2x2x128xf32>
    %c2_64 = arith.constant 2 : index
    %c1_65 = arith.constant 1 : index
    %65 = memref.load %arg1[%c2_64, %c1_65] : memref<3x4xf32, #tpu.memory_space<smem>>
    %66 = vector.broadcast %65 : f32 to vector<2x2x128xf32>
    %67 = arith.mulf %64, %66 : vector<2x2x128xf32>
    %68 = arith.addf %62, %67 : vector<2x2x128xf32>
    %c0_66 = arith.constant 0 : index
    %c2_67 = arith.constant 2 : index
    %c0_68 = arith.constant 0 : index
    %c0_69 = arith.constant 0 : index
    %69 = vector.load %arg3[%c0_66, %c2_67, %c0_68, %c0_69] : memref<2x4x2x128xf32, #tpu.memory_space<vmem>>, vector<2x1x2x128xf32>
    %70 = vector.shape_cast %69 : vector<2x1x2x128xf32> to vector<2x2x128xf32>
    %c2_70 = arith.constant 2 : index
    %c2_71 = arith.constant 2 : index
    %71 = memref.load %arg1[%c2_70, %c2_71] : memref<3x4xf32, #tpu.memory_space<smem>>
    %72 = vector.broadcast %71 : f32 to vector<2x2x128xf32>
    %73 = arith.mulf %70, %72 : vector<2x2x128xf32>
    %74 = arith.addf %68, %73 : vector<2x2x128xf32>
    %c0_72 = arith.constant 0 : index
    %c3_73 = arith.constant 3 : index
    %c0_74 = arith.constant 0 : index
    %c0_75 = arith.constant 0 : index
    %75 = vector.load %arg3[%c0_72, %c3_73, %c0_74, %c0_75] : memref<2x4x2x128xf32, #tpu.memory_space<vmem>>, vector<2x1x2x128xf32>
    %76 = vector.shape_cast %75 : vector<2x1x2x128xf32> to vector<2x2x128xf32>
    %c2_76 = arith.constant 2 : index
    %c3_77 = arith.constant 3 : index
    %77 = memref.load %arg1[%c2_76, %c3_77] : memref<3x4xf32, #tpu.memory_space<smem>>
    %78 = vector.broadcast %77 : f32 to vector<2x2x128xf32>
    %79 = arith.mulf %76, %78 : vector<2x2x128xf32>
    %80 = arith.addf %74, %79 : vector<2x2x128xf32>
    %c2_78 = arith.constant 2 : index
    %81 = memref.load %arg2[%c2_78] : memref<3xf32, #tpu.memory_space<smem>>
    %82 = vector.broadcast %81 : f32 to vector<2x2x128xf32>
    %83 = arith.addf %80, %82 : vector<2x2x128xf32>
    %c0_79 = arith.constant 0 : index
    %c2_80 = arith.constant 2 : index
    %c0_81 = arith.constant 0 : index
    %c0_82 = arith.constant 0 : index
    %84 = vector.load %arg4[%c0_79, %c2_80, %c0_81, %c0_82] : memref<2x3x2x128xf32, #tpu.memory_space<vmem>>, vector<2x1x2x128xf32>
    %85 = vector.shape_cast %84 : vector<2x1x2x128xf32> to vector<2x2x128xf32>
    %86 = vector.shape_cast %83 : vector<2x2x128xf32> to vector<2x1x2x128xf32>
    tpu.vector_store %arg4[%c0_79, %c2_80, %c0_81, %c0_82], %86 {strides = array<i32>} : memref<2x3x2x128xf32, #tpu.memory_space<vmem>>, vector<2x1x2x128xf32>,
    return
  }
  func.func @transform_0(%arg0: i32) -> (i32, i32) {
    %c0_i32 = arith.constant 0 : i32
    %c0_i32_0 = arith.constant 0 : i32
    %c0_i32_1 = arith.constant 0 : i32
    return %c0_i32, %c0_i32_0 : i32, i32
  }
  func.func @transform_1(%arg0: i32) -> i32 {
    %c0_i32 = arith.constant 0 : i32
    %c0_i32_0 = arith.constant 0 : i32
    return %c0_i32 : i32
  }
  func.func @transform_2(%arg0: i32) -> (i32, i32, i32, i32) {
    %c0_i32 = arith.constant 0 : i32
    %c0_i32_0 = arith.constant 0 : i32
    %c0_i32_1 = arith.constant 0 : i32
    %c0_i32_2 = arith.constant 0 : i32
    return %c0_i32, %c0_i32_0, %arg0, %c0_i32_1 : i32, i32, i32, i32
  }
  func.func @transform_3(%arg0: i32) -> (i32, i32, i32, i32) {
    %c0_i32 = arith.constant 0 : i32
    %c0_i32_0 = arith.constant 0 : i32
    %c0_i32_1 = arith.constant 0 : i32
    %c0_i32_2 = arith.constant 0 : i32
    return %c0_i32, %c0_i32_0, %arg0, %c0_i32_1 : i32, i32, i32, i32
  }
}

</mosaic_0001>

<llo_original>
// kernel: tpu_custom_call.1
$region0: #{tpu_custom_call.1}
  #allocation0 [shape = 'u32[]', space=smem, size = 0x4, offset = 0x4, fixed_abs, tag = 'smem constant byte address 0x4 - core index']
  #allocation1 [shape = 'u32[144,128]{1,0:T(1,128)}', space=vmem, size = 0x12000, scoped, tag = 'internal scratch']
  %s0 = inlined_call_operand.hbm [shape: f32[3,4], index: 0, kind: input, shape index: {}]
  %s1 = inlined_call_operand.vmem [shape: f32[3], index: 1, kind: input, shape index: {}]
  %s2 = inlined_call_operand.hbm [shape: f32[2,4,2,128], index: 2, kind: input, shape index: {}]
  %s3 = inlined_call_operand.hbm [shape: f32[2,3,2,128], index: 3, kind: output, shape index: {}]
  %s4 = sld [smem:[#allocation0]]
  $region34: #{tpu_custom_call.1} parent=0
    _
  %s6 = ssub.s32 1, %s4
  %s7 = scalar_select 0, %s6, %s4
  $region1: #{tpu_custom_call.1} parent=0
    #allocation2 [shape = 'u8[2048]{0}', space=smem, size = 0x800, scoped, tag = 'input window, operand 0, single buffered']
    #allocation3 [shape = 's32[1]{0}', space=sflag, size = 0x4, scoped, tag = 'scoped memory for tpu_custom_call.1']
    #allocation4 [shape = 's32[1]{0}', space=sflag, size = 0x4, scoped, tag = 'scoped memory for tpu_custom_call.1']
    #allocation5 [shape = 's32[1]{0}', space=sflag, size = 0x4, scoped, tag = 'scoped memory for tpu_custom_call.1']
    #allocation6 [shape = 's32[1]{0}', space=sflag, size = 0x4, scoped, tag = 'scoped memory for tpu_custom_call.1']
    #allocation7 [shape = 'u8[512]{0}', space=smem, size = 0x200, scoped, tag = 'input window, operand 1, single buffered']
    #allocation8 [shape = 'u8[8192]{0}', space=vmem, size = 0x2000, scoped, tag = 'input window, operand 2, single buffered']
    #allocation9 [shape = 'u8[6144]{0}', space=vmem, size = 0x1800, scoped, tag = 'output window, operand 0, single buffered']
    %8 = vsyncpa [#allocation5], 0
    %9 = vsyncpa [#allocation6], 0
    %10 = vsyncpa [#allocation3], 0
    %11 = vsyncpa [#allocation4], 0
    // Predicated region
    $region2: #{tpu_custom_call.1} parent=1 // pred_check
      _
    $region3: #{tpu_custom_call.1} parent=1 // pred_check_branch
      %13 = sbr.rel (0) target = $region5
    $region4: #{tpu_custom_call.1} parent=1 // pred_region
      %s15 = ssub.s32 64, 64
      %16 = vsyncadd [#allocation5], %s15
      %19 = dma.hbm_to_smem %s0, 64, [#allocation2], [#allocation5]
    $region5: #{tpu_custom_call.1} parent=1 // pred_fallthru
      _
    // Predicated region
    $region6: #{tpu_custom_call.1} parent=1 // pred_check
      _
    $region7: #{tpu_custom_call.1} parent=1 // pred_check_branch
      %21 = sbr.rel (0) target = $region9
    $region8: #{tpu_custom_call.1} parent=1 // pred_region
      %s23 = ssub.s32 16, 16
      %24 = vsyncadd [#allocation6], %s23
      %s26 = sshll.u32 %s1, 4
      %s27 = int_to_ptr.vmem [resolvable:$true] %s26
      %29 = dma.vmem_to_smem %s27, 16, [#allocation7], [#allocation6]
    $region9: #{tpu_custom_call.1} parent=1 // pred_fallthru
      _
    // Predicated region
    $region10: #{tpu_custom_call.1} parent=1 // pred_check
      _
    $region11: #{tpu_custom_call.1} parent=1 // pred_check_branch
      %31 = sbr.rel (0) target = $region13
    $region12: #{tpu_custom_call.1} parent=1 // pred_region
      %s33 = ssub.s32 256, 256
      %34 = vsyncadd [#allocation3], %s33
      %s35 = sshll.u32 [#allocation8], 4
      %s36 = int_to_ptr.vmem [resolvable:$true] %s35
      %41 = dma.hbm_to_vmem [thread:$0]  %s2, 256, %s36, [#allocation3], 32, 32, 2
    $region13: #{tpu_custom_call.1} parent=1 // pred_fallthru
      _
    // Predicated region
    $region14: #{tpu_custom_call.1} parent=1 // pred_check
      _
    $region15: #{tpu_custom_call.1} parent=1 // pred_check_branch
      %43 = sbr.rel (0) target = $region17
    $region16: #{tpu_custom_call.1} parent=1 // pred_region
      %44 = dma.done [#allocation5], 64
    $region17: #{tpu_custom_call.1} parent=1 // pred_fallthru
      _
    // Predicated region
    $region18: #{tpu_custom_call.1} parent=1 // pred_check
      _
    $region19: #{tpu_custom_call.1} parent=1 // pred_check_branch
      %46 = sbr.rel (0) target = $region21
    $region20: #{tpu_custom_call.1} parent=1 // pred_region
      %47 = dma.done [#allocation6], 16
    $region21: #{tpu_custom_call.1} parent=1 // pred_fallthru
      _
    // Predicated region
    $region22: #{tpu_custom_call.1} parent=1 // pred_check
      _
    $region23: #{tpu_custom_call.1} parent=1 // pred_check_branch
      %49 = sbr.rel (0) target = $region25
    $region24: #{tpu_custom_call.1} parent=1 // pred_region
      %50 = dma.done [#allocation3], 256
    $region25: #{tpu_custom_call.1} parent=1 // pred_fallthru
      _
    %51 = sfence
    %v52 = vld [vmem:[#allocation8] sm:$0x3]
    %v53 = vld [vmem:[#allocation8 + $0x8] sm:$0x3]
    %s54 = sld [smem:[#allocation2]]
    %v55 = vstv %s54
    %v56 = vmul.f32 %v52, %v55
    %v57 = vmul.f32 %v53, %v55
    %s58 = scalar_lea.vmem [#allocation8], 2
    %v59 = vld [vmem:[%s58] sm:$0x3]
    %v60 = vld [vmem:[%s58 + $0x8] sm:$0x3]
    %s61 = sld [smem:[#allocation2 + $0x1]]
    %v62 = vstv %s61
    %v63 = vmul.f32 %v59, %v62
    %v64 = vmul.f32 %v60, %v62
    %v65 = vadd.f32 %v56, %v63
    %v66 = vadd.f32 %v57, %v64
    %s67 = scalar_lea.vmem [#allocation8], 4
    %v68 = vld [vmem:[%s67] sm:$0x3]
    %v69 = vld [vmem:[%s67 + $0x8] sm:$0x3]
    %s70 = sld [smem:[#allocation2 + $0x2]]
    %v71 = vstv %s70
    %v72 = vmul.f32 %v68, %v71
    %v73 = vmul.f32 %v69, %v71
    %v74 = vadd.f32 %v65, %v72
    %v75 = vadd.f32 %v66, %v73
    %s76 = scalar_lea.vmem [#allocation8], 6
    %v77 = vld [vmem:[%s76] sm:$0x3]
    %v78 = vld [vmem:[%s76 + $0x8] sm:$0x3]
    %s79 = sld [smem:[#allocation2 + $0x3]]
    %v80 = vstv %s79
    %v81 = vmul.f32 %v77, %v80
    %v82 = vmul.f32 %v78, %v80
    %v83 = vadd.f32 %v74, %v81
    %v84 = vadd.f32 %v75, %v82
    %s85 = sld [smem:[#allocation7]]
    %v86 = vstv %s85
    %v87 = vadd.f32 %v83, %v86
    %v88 = vadd.f32 %v84, %v86
    %89 = vst [vmem:[#allocation9] sm:$0x3] %v87
    %90 = vst [vmem:[#allocation9 + $0x6] sm:$0x3] %v88
    %v91 = vld [vmem:[#allocation8] sm:$0x3]
    %v92 = vld [vmem:[#allocation8 + $0x8] sm:$0x3]
    %s93 = sld [smem:[#allocation2 + $0x80]]
    %v94 = vstv %s93
    %v95 = vmul.f32 %v91, %v94
    %v96 = vmul.f32 %v92, %v94
    %v97 = vld [vmem:[%s58] sm:$0x3]
    %v98 = vld [vmem:[%s58 + $0x8] sm:$0x3]
    %s99 = sld [smem:[#allocation2 + $0x81]]
    %v100 = vstv %s99
    %v101 = vmul.f32 %v97, %v100
    %v102 = vmul.f32 %v98, %v100
    %v103 = vadd.f32 %v95, %v101
    %v104 = vadd.f32 %v96, %v102
    %v105 = vld [vmem:[%s67] sm:$0x3]
    %v106 = vld [vmem:[%s67 + $0x8] sm:$0x3]
    %s107 = sld [smem:[#allocation2 + $0x82]]
    %v108 = vstv %s107
    %v109 = vmul.f32 %v105, %v108
    %v110 = vmul.f32 %v106, %v108
    %v111 = vadd.f32 %v103, %v109
    %v112 = vadd.f32 %v104, %v110
    %v113 = vld [vmem:[%s76] sm:$0x3]
    %v114 = vld [vmem:[%s76 + $0x8] sm:$0x3]
    %s115 = sld [smem:[#allocation2 + $0x83]]
    %v116 = vstv %s115
    %v117 = vmul.f32 %v113, %v116
    %v118 = vmul.f32 %v114, %v116
    %v119 = vadd.f32 %v111, %v117
    %v120 = vadd.f32 %v112, %v118
    %s121 = sld [smem:[#allocation7 + $0x1]]
    %v122 = vstv %s121
    %v123 = vadd.f32 %v119, %v122
    %v124 = vadd.f32 %v120, %v122
    %s125 = scalar_lea.vmem [#allocation9], 2
    %126 = vst [vmem:[%s125] sm:$0x3] %v123
    %127 = vst [vmem:[%s125 + $0x6] sm:$0x3] %v124
    %v128 = vld [vmem:[#allocation8] sm:$0x3]
    %v129 = vld [vmem:[#allocation8 + $0x8] sm:$0x3]
    %s130 = sld [smem:[#allocation2 + $0x100]]
    %v131 = vstv %s130
    %v132 = vmul.f32 %v128, %v131
    %v133 = vmul.f32 %v129, %v131
    %v134 = vld [vmem:[%s58] sm:$0x3]
    %v135 = vld [vmem:[%s58 + $0x8] sm:$0x3]
    %s136 = sld [smem:[#allocation2 + $0x101]]
    %v137 = vstv %s136
    %v138 = vmul.f32 %v134, %v137
    %v139 = vmul.f32 %v135, %v137
    %v140 = vadd.f32 %v132, %v138
    %v141 = vadd.f32 %v133, %v139
    %v142 = vld [vmem:[%s67] sm:$0x3]
    %v143 = vld [vmem:[%s67 + $0x8] sm:$0x3]
    %s144 = sld [smem:[#allocation2 + $0x102]]
    %v145 = vstv %s144
    %v146 = vmul.f32 %v142, %v145
    %v147 = vmul.f32 %v143, %v145
    %v148 = vadd.f32 %v140, %v146
    %v149 = vadd.f32 %v141, %v147
    %v150 = vld [vmem:[%s76] sm:$0x3]
    %v151 = vld [vmem:[%s76 + $0x8] sm:$0x3]
    %s152 = sld [smem:[#allocation2 + $0x103]]
    %v153 = vstv %s152
    %v154 = vmul.f32 %v150, %v153
    %v155 = vmul.f32 %v151, %v153
    %v156 = vadd.f32 %v148, %v154
    %v157 = vadd.f32 %v149, %v155
    %s158 = sld [smem:[#allocation7 + $0x2]]
    %v159 = vstv %s158
    %v160 = vadd.f32 %v156, %v159
    %v161 = vadd.f32 %v157, %v159
    %s162 = scalar_lea.vmem [#allocation9], 4
    %163 = vst [vmem:[%s162] sm:$0x3] %v160
    %164 = vst [vmem:[%s162 + $0x6] sm:$0x3] %v161
    // Predicated region
    $region26: #{tpu_custom_call.1} parent=1 // pred_check
      _
    $region27: #{tpu_custom_call.1} parent=1 // pred_check_branch
      %166 = sbr.rel (0) target = $region29
    $region28: #{tpu_custom_call.1} parent=1 // pred_region
      %s168 = ssub.s32 192, 192
      %169 = vsyncadd [#allocation4], %s168
      %s170 = sshll.u32 [#allocation9], 4
      %s171 = int_to_ptr.vmem [resolvable:$true] %s170
      %176 = dma.vmem_to_hbm [thread:$0]  %s171, 192, %s3, [#allocation4], 32, 32, 2
    $region29: #{tpu_custom_call.1} parent=1 // pred_fallthru
      _
    // Predicated region
    $region30: #{tpu_custom_call.1} parent=1 // pred_check
      _
    $region31: #{tpu_custom_call.1} parent=1 // pred_check_branch
      %178 = sbr.rel (0) target = $region33
    $region32: #{tpu_custom_call.1} parent=1 // pred_region
      %179 = dma.done [#allocation4], 192
    $region33: #{tpu_custom_call.1} parent=1 // pred_fallthru
      _
    %180 = vsyncpa [#allocation3], 1
    %181 = vsyncpa [#allocation4], 1
    %182 = vsyncpa [#allocation5], 1
    %183 = vsyncpa [#allocation6], 1

</llo_original>
